<compile_context>
chip_gen: v7x
topology: tpu7x:2x2x1
jax: 0.10.0
libtpu: 0.0.40
codegen_flags: <defaults>
</compile_context>

<pallas_src>
import functools
import math

import jax
import jax.numpy as jnp
from jax import lax
from jax.experimental import pallas as pl
from jax.experimental.pallas import tpu as pltpu

_HALO = 8  # group extent of the halo blocks (keeps the (8, 128) block rule)


def _roll(v, shift, axis):
    """jnp.roll-equivalent shift via the XLU; static shift, skips no-ops."""
    size = v.shape[axis]
    shift = shift % size
    if shift == 0:
        return v
    return pltpu.roll(v, shift, axis=axis)


def _laplace_kernel(W, R, TG, LW, nt, has_halo, *refs):
    # x_ref:   (C, TG, LW)   R image rows folded into each lane-group, LW = R*W
    # top_ref: (C, 8, LW)    8-group block containing the lane-group just above
    #                        this tile (its last row, sub-row 7, is the halo)
    # bot_ref: (C, 8, LW)    8-group block containing the lane-group just below
    #                        this tile (its first row, sub-row 0, is the halo)
    # o_ref:   (TG, LW)
    if has_halo:
        x_ref, top_ref, bot_ref, o_ref = refs
    else:
        x_ref, o_ref = refs
        top_ref = bot_ref = None
    C = x_ref.shape[0]

    # Sum input channels first: the conv weight repeats the same 3x3 kernel on
    # every input channel, so conv(x, k) == laplace(sum_c x_c).
    xs = x_ref[0]
    for c in range(1, C):
        xs = xs + x_ref[c]                                   # (TG, LW)

    # Cheap (1, LW) / (TG, 1) masks; jnp.where broadcasts them over the tile.
    lane = lax.broadcasted_iota(jnp.int32, (1, LW), 1)
    col = (lane & (W - 1)) if (W & (W - 1)) == 0 else (lane % W)
    is_col0 = col == 0                                       # (1, LW)
    is_colW = col == W - 1                                   # (1, LW)
    is_first = lane < W                                      # first row of a group
    is_last = lane >= LW - W                                 # last row of a group
    grp = lax.broadcasted_iota(jnp.int32, (TG, 1), 0)
    is_grp0 = grp == 0                                       # (TG, 1)
    is_grpL = grp == TG - 1                                  # (TG, 1)

    # Channel-summed halo rows (row just above / below this tile), rotated so
    # the data lands in lanes [0, W) / [LW-W, LW); zeroed at the image border.
    if has_halo:
        t = pl.program_id(1)
        tb = top_ref[...]                                    # (C, 8, LW)
        bb = bot_ref[...]
        top_s = tb[0, _HALO - 1:_HALO, :]
        bot_s = bb[0, 0:1, :]
        for c in range(1, C):
            top_s = top_s + tb[c, _HALO - 1:_HALO, :]
            bot_s = bot_s + bb[c, 0:1, :]
        top_row = _roll(top_s, W, axis=1) * (t > 0).astype(xs.dtype)
        bot_row = _roll(bot_s, -W, axis=1) * (t < nt - 1).astype(xs.dtype)
    else:                                                    # single tile: borders only
        top_row = 0.0
        bot_row = 0.0

    # Horizontal neighbours: flat +/-1 lane shift; col masks give zero padding.
    left = jnp.where(is_col0, 0.0, _roll(xs, 1, axis=1))
    right = jnp.where(is_colW, 0.0, _roll(xs, -1, axis=1))

    # Vertical neighbours: flat +/-W lane shift; the first/last image row of a
    # lane-group takes its neighbour from the adjacent group (sublane roll),
    # and the first/last group of the tile takes it from the halo row.
    if R > 1:
        up_w = _roll(xs, W, axis=1)
        up_s = jnp.where(is_grp0, top_row, _roll(up_w, 1, axis=0))
        up = jnp.where(is_first, up_s, up_w)
        dn_w = _roll(xs, -W, axis=1)
        dn_s = jnp.where(is_grpL, bot_row, _roll(dn_w, -1, axis=0))
        down = jnp.where(is_last, dn_s, dn_w)
    else:  # LW == W: one image row per lane-group
        up = jnp.where(is_grp0, top_row, _roll(xs, 1, axis=0))
        down = jnp.where(is_grpL, bot_row, _roll(xs, -1, axis=0))

    o_ref[...] = 4.0 * xs - up - down - left - right


def _tpu_budget():
    """Generation-aware block / VMEM budgets (v7x: 64 MiB/TC, 2 TCs)."""
    kind = ""
    try:
        kind = jax.devices()[0].device_kind.lower()
    except Exception:
        pass
    vmem_cap = None
    try:
        vmem_cap = int(pltpu.get_tpu_info().vmem_capacity_bytes)
    except Exception:
        pass
    small_vmem = ("v7" in kind) or (vmem_cap is not None and vmem_cap <= 64 * 1024 * 1024)
    if small_vmem:
        # ~6-8 full-tile f32 temporaries + double-buffered I/O => ~5x block size.
        return {"block_bytes": 4 << 20, "vmem_limit": 40 << 20, "min_steps": 4}
    return {"block_bytes": 8 << 20, "vmem_limit": 64 << 20, "min_steps": 2}


def _choose_tile_groups(G, C, LW, N, itemsize, target_block_bytes, min_grid_steps):
    """Largest H-tile (in lane-groups) whose input block stays under
    target_block_bytes, satisfies the (8,128) block rule, and (softly) leaves
    >= min_grid_steps grid steps for pipelining / megacore sharding."""
    divisors = [d for d in range(1, G + 1) if G % d == 0]
    valid = [d for d in divisors if d % 8 == 0 or d == G]
    sized = [d for d in valid if C * d * LW * itemsize <= target_block_bytes]
    if not sized:
        # TODO(synk): for pathological G (no divisor that is a multiple of 8)
        # this forces one big block; pad G to a multiple of 8 instead if that
        # ever exceeds the VMEM budget.
        sized = [min(valid)]
    stepped = [d for d in sized if N * (G // d) >= min_grid_steps]
    return max(stepped if stepped else sized)


def laplace_filter(x, *, block_bytes_override=None):
    """Pallas equivalent of LaplaceFilter.forward: conv2d(x, laplace_k, padding=1)."""
    N, C, H, W = x.shape
    assert C == 3, "LaplaceFilter expects 3 input channels"

    # Fold R consecutive image rows into the lane axis so LW = R*W is a
    # multiple of 128 (lane-dense blocks/stores). Pad H with zero rows if
    # needed (exact: padded zeros reproduce conv2d's zero padding).
    R = 128 // math.gcd(W, 128)
    H_pad = -(-H // R) * R
    if H_pad != H:
        x = jnp.pad(x, ((0, 0), (0, 0), (0, H_pad - H), (0, 0)))
    LW = R * W
    G = H_pad // R

    budget = _tpu_budget()
    block_bytes = block_bytes_override or budget["block_bytes"]
    TG = _choose_tile_groups(G, C, LW, N, x.dtype.itemsize,
                             block_bytes, budget["min_steps"])
    nt = G // TG                       # H-tiles per image
    has_halo = nt > 1                  # single tile => both borders are zero pad

    # Free (metadata-only) reshape: fold R rows into the lane axis.
    xf = x.reshape(N, C, G, LW)

    in_specs = [pl.BlockSpec((None, C, TG, LW), lambda n, t: (n, 0, t, 0))]
    args = [xf]
    if has_halo:
        # nt > 1 => TG % 8 == 0 => G % 8 == 0, so the halo blocks tile exactly.
        TB = TG // _HALO
        GB_last = G // _HALO - 1
        in_specs += [
            pl.BlockSpec((None, C, _HALO, LW),
                         lambda n, t: (n, 0, jnp.maximum(t * TB - 1, 0), 0)),
            pl.BlockSpec((None, C, _HALO, LW),
                         lambda n, t: (n, 0, jnp.minimum((t + 1) * TB, GB_last), 0)),
        ]
        args += [xf, xf]

    kernel = functools.partial(_laplace_kernel, W, R, TG, LW, nt, has_halo)
    out = pl.pallas_call(
        kernel,
        out_shape=jax.ShapeDtypeStruct((N, G, LW), x.dtype),
        grid=(N, nt),
        in_specs=in_specs,
        out_specs=pl.BlockSpec((None, TG, LW), lambda n, t: (n, t, 0)),
        compiler_params=pltpu.CompilerParams(
            dimension_semantics=("parallel", "parallel"),
            vmem_limit_bytes=budget["vmem_limit"],
        ),
        cost_estimate=pl.CostEstimate(
            flops=7 * N * H_pad * W,
            transcendentals=0,
            bytes_accessed=(C + 1) * N * H_pad * W * x.dtype.itemsize,
        ),
    )(*args)

    # Free reshape back to NCHW (single output channel), drop padded rows.
    out = out.reshape(N, 1, H_pad, W)
    if H_pad != H:
        out = out[:, :, :H, :]
    return out


def _make_kernel_weights():
    # Mirrors LaplaceFilter._make_kernel(): shape (1, 3, 3, 3), same Laplace
    # stencil on every input channel.
    k2d = jnp.array([[0., -1., 0.],
                     [-1., 4., -1.],
                     [0., -1., 0.]], dtype=jnp.float32)
    return jnp.broadcast_to(k2d, (1, 3, 3, 3))


def _reference(x):
    # Pure-JAX reference: conv2d NCHW with padding=1.
    w = _make_kernel_weights()
    return lax.conv_general_dilated(
        x, w, window_strides=(1, 1), padding=((1, 1), (1, 1)),
        dimension_numbers=("NCHW", "OIHW", "NCHW"))


if __name__ == "__main__":
    key = jax.random.PRNGKey(0)
    cases = [
        ((2, 3, 16, 16), None),        # W<128 row folding, single H-tile
        ((2, 3, 64, 64), None),        # R=2 folding, single H-tile, grid=(2,1)
        ((1, 3, 256, 16), 16 * 1024),  # forced small blocks -> nt>1, in-kernel halos
        ((1, 3, 20, 16), None),        # H not a multiple of the fold factor -> row padding
    ]
    for shape, blk in cases:
        key, sub = jax.random.split(key)
        x = jax.random.normal(sub, shape, dtype=jnp.float32)

        out = jax.block_until_ready(laplace_filter(x, block_bytes_override=blk))
        ref = _reference(x)

        assert out.shape == (shape[0], 1, shape[2], shape[3]), out.shape
        assert jnp.allclose(out, ref, atol=1e-4, rtol=1e-4), f"mismatch for {shape}"

    print("KERNEL_OK")
</pallas_src>

<mosaic_0001>
module attributes {stable_mosaic.version = 11 : i64} {
  func.func @_laplace_kernel(%arg0: i32, %arg1: i32, %arg2: memref<1x3x2x128xf32, #tpu.memory_space<vmem>>, %arg3: memref<1x2x128xf32, #tpu.memory_space<vmem>>) attributes {dimension_semantics = [#tpu.dimension_semantics<parallel>, #tpu.dimension_semantics<parallel>], iteration_bounds = array<i64: 2, 1>, scalar_prefetch = 0 : i64, scratch_operands = 0 : i64, tpu.core_type = #tpu.core_type<tc>, window_params = [{transform_indices = @transform_0, window_bounds = array<i64: 1, 3, 2, 128>}, {transform_indices = @transform_1, window_bounds = array<i64: 1, 2, 128>}]} {
    %c0 = arith.constant 0 : index
    %c0_0 = arith.constant 0 : index
    %c0_1 = arith.constant 0 : index
    %c0_2 = arith.constant 0 : index
    %0 = vector.load %arg2[%c0, %c0_0, %c0_1, %c0_2] : memref<1x3x2x128xf32, #tpu.memory_space<vmem>>, vector<1x1x2x128xf32>
    %1 = vector.shape_cast %0 : vector<1x1x2x128xf32> to vector<2x128xf32>
    %c0_3 = arith.constant 0 : index
    %c1 = arith.constant 1 : index
    %c0_4 = arith.constant 0 : index
    %c0_5 = arith.constant 0 : index
    %2 = vector.load %arg2[%c0_3, %c1, %c0_4, %c0_5] : memref<1x3x2x128xf32, #tpu.memory_space<vmem>>, vector<1x1x2x128xf32>
    %3 = vector.shape_cast %2 : vector<1x1x2x128xf32> to vector<2x128xf32>
    %4 = arith.addf %1, %3 : vector<2x128xf32>
    %c0_6 = arith.constant 0 : index
    %c2 = arith.constant 2 : index
    %c0_7 = arith.constant 0 : index
    %c0_8 = arith.constant 0 : index
    %5 = vector.load %arg2[%c0_6, %c2, %c0_7, %c0_8] : memref<1x3x2x128xf32, #tpu.memory_space<vmem>>, vector<1x1x2x128xf32>
    %6 = vector.shape_cast %5 : vector<1x1x2x128xf32> to vector<2x128xf32>
    %7 = arith.addf %4, %6 : vector<2x128xf32>
    %8 = tpu.iota {dimensions = array<i32: 1>} : vector<1x128xi32>
    %c15_i32 = arith.constant 15 : i32
    %9 = vector.broadcast %c15_i32 : i32 to vector<1x128xi32>
    %10 = arith.andi %8, %9 : vector<1x128xi32>
    %c0_i32 = arith.constant 0 : i32
    %11 = vector.broadcast %c0_i32 : i32 to vector<1x128xi32>
    %12 = arith.cmpi eq, %10, %11 : vector<1x128xi32>
    %c15_i32_9 = arith.constant 15 : i32
    %13 = vector.broadcast %c15_i32_9 : i32 to vector<1x128xi32>
    %14 = arith.cmpi eq, %10, %13 : vector<1x128xi32>
    %c16_i32 = arith.constant 16 : i32
    %15 = vector.broadcast %c16_i32 : i32 to vector<1x128xi32>
    %16 = arith.cmpi slt, %8, %15 : vector<1x128xi32>
    %c112_i32 = arith.constant 112 : i32
    %17 = vector.broadcast %c112_i32 : i32 to vector<1x128xi32>
    %18 = arith.cmpi sge, %8, %17 : vector<1x128xi32>
    %19 = tpu.iota {dimensions = array<i32: 0>} : vector<2x1xi32>
    %c0_i32_10 = arith.constant 0 : i32
    %20 = vector.broadcast %c0_i32_10 : i32 to vector<2x1xi32>
    %21 = arith.cmpi eq, %19, %20 : vector<2x1xi32>
    %c1_i32 = arith.constant 1 : i32
    %22 = vector.broadcast %c1_i32 : i32 to vector<2x1xi32>
    %23 = arith.cmpi eq, %19, %22 : vector<2x1xi32>
    %c1_i32_11 = arith.constant 1 : i32
    %24 = tpu.dynamic_rotate %7 by %c1_i32_11 dim 1 : vector<2x128xf32>, i32 -> vector<2x128xf32>
    %cst = arith.constant 0.000000e+00 : f32
    %25 = vector.shape_cast %12 : vector<1x128xi1> to vector<1x128xi1>
    %26 = vector.broadcast %25 : vector<1x128xi1> to vector<2x128xi1>
    %27 = vector.broadcast %cst : f32 to vector<2x128xf32>
    %28 = arith.select %26, %27, %24 : vector<2x128xi1>, vector<2x128xf32>
    %c127_i32 = arith.constant 127 : i32
    %29 = tpu.dynamic_rotate %7 by %c127_i32 dim 1 : vector<2x128xf32>, i32 -> vector<2x128xf32>
    %cst_12 = arith.constant 0.000000e+00 : f32
    %30 = vector.shape_cast %14 : vector<1x128xi1> to vector<1x128xi1>
    %31 = vector.broadcast %30 : vector<1x128xi1> to vector<2x128xi1>
    %32 = vector.broadcast %cst_12 : f32 to vector<2x128xf32>
    %33 = arith.select %31, %32, %29 : vector<2x128xi1>, vector<2x128xf32>
    %c16_i32_13 = arith.constant 16 : i32
    %34 = tpu.dynamic_rotate %7 by %c16_i32_13 dim 1 : vector<2x128xf32>, i32 -> vector<2x128xf32>
    %c1_i32_14 = arith.constant 1 : i32
    %35 = tpu.dynamic_rotate %34 by %c1_i32_14 dim 0 : vector<2x128xf32>, i32 -> vector<2x128xf32>
    %cst_15 = arith.constant 0.000000e+00 : f32
    %36 = vector.shape_cast %21 : vector<2x1xi1> to vector<2x1xi1>
    %37 = vector.broadcast %36 : vector<2x1xi1> to vector<2x128xi1>
    %38 = vector.broadcast %cst_15 : f32 to vector<2x128xf32>
    %39 = arith.select %37, %38, %35 : vector<2x128xi1>, vector<2x128xf32>
    %40 = vector.shape_cast %16 : vector<1x128xi1> to vector<1x128xi1>
    %41 = vector.broadcast %40 : vector<1x128xi1> to vector<2x128xi1>
    %42 = arith.select %41, %39, %34 : vector<2x128xi1>, vector<2x128xf32>
    %c112_i32_16 = arith.constant 112 : i32
    %43 = tpu.dynamic_rotate %7 by %c112_i32_16 dim 1 : vector<2x128xf32>, i32 -> vector<2x128xf32>
    %c1_i32_17 = arith.constant 1 : i32
    %44 = tpu.dynamic_rotate %43 by %c1_i32_17 dim 0 : vector<2x128xf32>, i32 -> vector<2x128xf32>
    %cst_18 = arith.constant 0.000000e+00 : f32
    %45 = vector.shape_cast %23 : vector<2x1xi1> to vector<2x1xi1>
    %46 = vector.broadcast %45 : vector<2x1xi1> to vector<2x128xi1>
    %47 = vector.broadcast %cst_18 : f32 to vector<2x128xf32>
    %48 = arith.select %46, %47, %44 : vector<2x128xi1>, vector<2x128xf32>
    %49 = vector.shape_cast %18 : vector<1x128xi1> to vector<1x128xi1>
    %50 = vector.broadcast %49 : vector<1x128xi1> to vector<2x128xi1>
    %51 = arith.select %50, %48, %43 : vector<2x128xi1>, vector<2x128xf32>
    %cst_19 = arith.constant 4.000000e+00 : f32
    %52 = vector.broadcast %cst_19 : f32 to vector<2x128xf32>
    %53 = arith.mulf %52, %7 : vector<2x128xf32>
    %54 = arith.subf %53, %42 : vector<2x128xf32>
    %55 = arith.subf %54, %51 : vector<2x128xf32>
    %56 = arith.subf %55, %28 : vector<2x128xf32>
    %57 = arith.subf %56, %33 : vector<2x128xf32>
    %c0_20 = arith.constant 0 : index
    %c0_21 = arith.constant 0 : index
    %c0_22 = arith.constant 0 : index
    %58 = vector.load %arg3[%c0_20, %c0_21, %c0_22] : memref<1x2x128xf32, #tpu.memory_space<vmem>>, vector<1x2x128xf32>
    %59 = vector.shape_cast %58 : vector<1x2x128xf32> to vector<2x128xf32>
    %60 = vector.shape_cast %57 : vector<2x128xf32> to vector<1x2x128xf32>
    tpu.vector_store %arg3[%c0_20, %c0_21, %c0_22], %60 {strides = array<i32>} : memref<1x2x128xf32, #tpu.memory_space<vmem>>, vector<1x2x128xf32>,
    return
  }
  func.func @transform_0(%arg0: i32, %arg1: i32) -> (i32, i32, i32, i32) {
    %c0_i32 = arith.constant 0 : i32
    %c0_i32_0 = arith.constant 0 : i32
    %c0_i32_1 = arith.constant 0 : i32
    return %arg0, %c0_i32, %arg1, %c0_i32_0 : i32, i32, i32, i32
  }
  func.func @transform_1(%arg0: i32, %arg1: i32) -> (i32, i32, i32) {
    %c0_i32 = arith.constant 0 : i32
    %c0_i32_0 = arith.constant 0 : i32
    return %arg0, %arg1, %c0_i32 : i32, i32, i32
  }
}

</mosaic_0001>

<llo_original>
// kernel: tpu_custom_call.1
$region0: #{tpu_custom_call.1}
  #allocation0 [shape = 'u32[]', space=smem, size = 0x4, offset = 0x4, fixed_abs, tag = 'smem constant byte address 0x4 - core index']
  #allocation1 [shape = 'u32[144,128]{1,0:T(1,128)}', space=vmem, size = 0x12000, scoped, tag = 'internal scratch']
  %s0 = inlined_call_operand.hbm [shape: f32[2,3,2,128], index: 0, kind: input, shape index: {}]
  %s1 = inlined_call_operand.hbm [shape: f32[2,2,128], index: 1, kind: output, shape index: {}]
  %s2 = sld [smem:[#allocation0]]
  $region41: #{tpu_custom_call.1} parent=0
    _
  %s4 = ssub.s32 1, %s2
  %s5 = scalar_select 0, %s4, %s2
  $region1: #{tpu_custom_call.1} parent=0
    #allocation2 [shape = 'u8[6144]{0}', space=vmem, size = 0x1800, scoped, tag = 'input window, operand 0']
    #allocation3 [shape = 's32[2]{0}', space=sflag, size = 0x8, scoped, tag = 'scoped memory for tpu_custom_call.1']
    #allocation4 [shape = 's32[2]{0}', space=sflag, size = 0x8, scoped, tag = 'scoped memory for tpu_custom_call.1']
    #allocation5 [shape = 'u8[2048]{0}', space=vmem, size = 0x800, scoped, tag = 'output window, operand 0']
    %6 = vsyncpa [#allocation3], 0
    %s7 = scalar_lea.sflag [#allocation3], 1
    %8 = vsyncpa %s7, 0
    %9 = vsyncpa [#allocation4], 0
    %s10 = scalar_lea.sflag [#allocation4], 1
    %11 = vsyncpa %s10, 0
    loop: start=0, step=1, limit=4
    $region2: #{tpu_custom_call.1} parent=1 // loop_pre_header
      _
    $region3: #{tpu_custom_call.1} parent=1 // loop_header
      %s13 = sphi 0, %s17
      %p14 = scmp.ge.s32.totalorder %s13, 4
      %s20 = sphi 0, %s32
      %s21 = sphi 0, %s28
      %s22 = sphi 0, %s20
      %s23 = sphi 0, %s21
      %s24 = sphi 0, %s22
      %s25 = sphi 0, %s23
      %s37 = sphi 0, %s39
      %s40 = sphi 0, %s37
      %s41 = sphi 0, %s40
      %s57 = sphi 0, %s41
      %s65 = sphi 0, %s67
      %s68 = sphi 0, %s65
      %s69 = sphi 0, %s68
      %s85 = sphi 0, %s69
    $region4: #{tpu_custom_call.1} parent=1 // loop_header_branch
      %16 = sbr.rel (%p14) target = $region8
    $region5: #{tpu_custom_call.1} parent=1 // loop_body
      %s18 = ssub.s32 %s13, 1
      %s19 = ssub.s32 %s13, 2
      %s26 = sadd.s32 1, %s21
      %p27 = scmp.ge.s32.totalorder %s26, 1
      %s28 = scalar_select %p27, 0, %s26
      %s29 = sadd.s32 1, %s20
      %s30 = scalar_select %p27, %s29, %s20
      %p31 = scmp.ge.s32.totalorder %s30, 2
      %s32 = scalar_select %p31, 0, %s30
      %s33 = ssub.s32 %s20, %s32
      %s34 = ssub.s32 %s21, %s28
      %s35 = sor.u32 %s33, %s34
      %p36 = scmp.eq.s32.totalorder %s35, 0
      %s38 = sadd.s32 %s37, 1
      %s39 = scalar_select %p36, %s37, %s38
      %p42 = pneg %p36
      %p43 = scmp.eq.s32.totalorder %s13, 1
      %p44 = por %p42, %p43
      %p45 = scmp.ne.s32.totalorder %s37, %s40
      %p46 = scmp.eq.s32.totalorder %s13, 0
      %p47 = por %p45, %p46
      %p48 = scmp.ne.s32.totalorder %s37, %s40
      %p49 = scmp.eq.s32.totalorder %s18, 1
      %p50 = por %p48, %p49
      %p51 = scmp.ne.s32.totalorder %s40, %s41
      %p52 = scmp.eq.s32.totalorder %s18, 0
      %p53 = por %p51, %p52
      %p54 = scmp.ne.s32.totalorder %s40, %s41
      %p55 = scmp.eq.s32.totalorder %s19, 1
      %p56 = por %p54, %p55
      %p58 = scmp.ne.s32.totalorder %s41, %s57
      %p59 = scmp.eq.s32.totalorder %s19, 0
      %p60 = por %p58, %p59
      %s61 = ssub.s32 %s20, %s32
      %s62 = ssub.s32 %s21, %s28
      %s63 = sor.u32 %s61, %s62
      %p64 = scmp.eq.s32.totalorder %s63, 0
      %s66 = sadd.s32 %s65, 1
      %s67 = scalar_select %p64, %s65, %s66
      %p70 = pneg %p64
      %p71 = scmp.eq.s32.totalorder %s13, 1
      %p72 = por %p70, %p71
      %p73 = scmp.ne.s32.totalorder %s65, %s68
      %p74 = scmp.eq.s32.totalorder %s13, 0
      %p75 = por %p73, %p74
      %p76 = scmp.ne.s32.totalorder %s65, %s68
      %p77 = scmp.eq.s32.totalorder %s18, 1
      %p78 = por %p76, %p77
      %p79 = scmp.ne.s32.totalorder %s68, %s69
      %p80 = scmp.eq.s32.totalorder %s18, 0
      %p81 = por %p79, %p80
      %p82 = scmp.ne.s32.totalorder %s68, %s69
      %p83 = scmp.eq.s32.totalorder %s19, 1
      %p84 = por %p82, %p83
      %p86 = scmp.ne.s32.totalorder %s69, %s85
      %p87 = scmp.eq.s32.totalorder %s19, 0
      %p88 = por %p86, %p87
      %p89 = scmp.le.s32.totalorder 1, %s13
      %p90 = scmp.lt.s32.totalorder %s13, 3
      %p91 = pnand %p89, %p90
      %p92 = pneg %p91
      // Predicated region
      $region9: #{tpu_custom_call.1} parent=5 // pred_check
        _
      $region10: #{tpu_custom_call.1} parent=5 // pred_check_branch
        %94 = sbr.rel (%p91) target = $region12
      $region11: #{tpu_custom_call.1} parent=5 // pred_region
        %s95 = ssub.s32 %s13, 1
      $region12: #{tpu_custom_call.1} parent=5 // pred_fallthru
        _
      %p96 = scmp.lt.s32.totalorder %s13, 2
      // Predicated region
      $region13: #{tpu_custom_call.1} parent=5 // pred_check
        %p97 = pneg %p96
      $region14: #{tpu_custom_call.1} parent=5 // pred_check_branch
        %99 = sbr.rel (%p97) target = $region16
      $region15: #{tpu_custom_call.1} parent=5 // pred_region
        // Predicated region
        $region17: #{tpu_custom_call.1} parent=15 // pred_check
          %p100 = pneg %p47
        $region18: #{tpu_custom_call.1} parent=15 // pred_check_branch
          %102 = sbr.rel (%p100) target = $region20
        $region19: #{tpu_custom_call.1} parent=15 // pred_region
          %s103 = sand.u32 %s37, 1
          %s104 = scalar_lea.sflag [#allocation3], %s103
          %s105 = sand.u32 %s37, 1
          %s106 = smul.addr %s105, 6
          %s107 = scalar_lea.vmem [#allocation2], %s106
          %s109 = ssub.s32 96, 96
          %110 = vsyncadd %s104, %s109
          %s111 = smul.addr %s20, 3
          %s112 = sadd.s32 %s21, %s111
          %s113 = smul.addr %s112, 32
          %s114 = scalar_lea.hbm %s0, %s113
          %s115 = sshll.u32 %s107, 4
          %s116 = int_to_ptr.vmem [resolvable:$true] %s115
          %121 = dma.hbm_to_vmem [thread:$0]  %s114, 96, %s116, %s104, 32, 32, 2
        $region20: #{tpu_custom_call.1} parent=15 // pred_fallthru
          _
      $region16: #{tpu_custom_call.1} parent=5 // pred_fallthru
        _
      %p122 = scmp.le.s32.totalorder 1, %s13
      %p123 = scmp.lt.s32.totalorder %s13, 3
      %p124 = pnand %p122, %p123
      %p125 = pneg %p124
      // Predicated region
      $region21: #{tpu_custom_call.1} parent=5 // pred_check
        _
      $region22: #{tpu_custom_call.1} parent=5 // pred_check_branch
        %127 = sbr.rel (%p124) target = $region24
      $region23: #{tpu_custom_call.1} parent=5 // pred_region
        %s128 = ssub.s32 %s13, 1
        %s129 = sand.u32 %s40, 1
        %s130 = scalar_lea.sflag [#allocation3], %s129
        %s131 = sand.u32 %s40, 1
        %s132 = smul.addr %s131, 6
        %s133 = scalar_lea.vmem [#allocation2], %s132
        // Predicated region
        $region25: #{tpu_custom_call.1} parent=23 // pred_check
          %p134 = pneg %p53
        $region26: #{tpu_custom_call.1} parent=23 // pred_check_branch
          %136 = sbr.rel (%p134) target = $region28
        $region27: #{tpu_custom_call.1} parent=23 // pred_region
          %137 = dma.done %s130, 96
        $region28: #{tpu_custom_call.1} parent=23 // pred_fallthru
          _
        %s138 = sand.u32 %s40, 1
        %s139 = scalar_lea.sflag [#allocation3], %s138
        %s140 = sand.u32 %s40, 1
        %s141 = smul.addr %s140, 6
        %s142 = scalar_lea.vmem [#allocation2], %s141
        %p143 = pneg %p53
        %p144 = pneg %p50
        %p145 = pneg %p81
        %p146 = pneg %p78
        %s147 = sand.u32 %s68, 1
        %s148 = scalar_lea.sflag [#allocation4], %s147
        %s149 = sand.u32 %s68, 1
        %s150 = smul.addr %s149, 2
        %s151 = scalar_lea.vmem [#allocation5], %s150
        %v152 = vld [vmem:[%s133] sm:$0x3]
        %s153 = scalar_lea.vmem %s133, 2 [#allocation2]
        %v154 = vld [vmem:[%s153] sm:$0x3]
        %v155 = vadd.f32 %v152, %v154
        %s156 = scalar_lea.vmem %s133, 4 [#allocation2]
        %v157 = vld [vmem:[%s156] sm:$0x3]
        %v158 = vadd.f32 %v155, %v157
        %v159 = vlaneseq
        %v160 = vand.u32 %v159, 127
        %v161 = vand.u32 %v160, 15
        %vm162 = vcmp.eq.s32.totalorder %v161, 0
        %vm163 = vcmp.eq.s32.totalorder %v161, 15
        %vm164 = vcmp.lt.s32.totalorder %v160, 16
        %vm165 = vcmp.ge.s32.totalorder %v160, 112
        %v166 = vlaneseq
        %v167 = vshrl.u32 %v166, 7
        %vm168 = vcmp.eq.s32.totalorder %v167, 0
        %vm169 = vcmp.eq.s32.totalorder %v167, 1
        %170 = vrot.lane.b32.xlu0 %v158, 1
        %v171 = vpop.permute.xlu0 %170
        %v172 = vsel %vm162, 1, 0
        %vm173 = vcmp.eq.s32.totalorder %v172, 1
        %v174 = vsel %vm173, 0.0, %v171
        %175 = vrot.lane.b32.xlu0 %v158, 127
        %v176 = vpop.permute.xlu0 %175
        %v177 = vsel %vm163, 1, 0
        %vm178 = vcmp.eq.s32.totalorder %v177, 1
        %v179 = vsel %vm178, 0.0, %v176
        %180 = vrot.lane.b32.xlu0 %v158, 16
        %v181 = vpop.permute.xlu0 %180
        %vm182 = vcmask 1047554
        %v183 = vrot.slane %v181, 6
        %v184 = vsel %vm182, %v183, %v181
        %v185 = vrot.slane %v184, 6
        %v186 = vsel %vm182, %v185, %v181
        %v187 = vsel %vm168, 1, 0
        %vm188 = vcmp.eq.s32.totalorder %v187, 1
        %v190 = vrot.slane %v186, 1
        %v192 = vsel %vm188, 0.0, %v190
        %v193 = vsel %vm164, 1, 0
        %vm194 = vcmp.eq.s32.totalorder %v193, 1
        %v195 = vsel %vm194, %v192, %v181
        %196 = vrot.lane.b32.xlu0 %v158, 112
        %v197 = vpop.permute.xlu0 %196
        %v198 = vrot.slane %v197, 6
        %v199 = vsel %vm182, %v198, %v197
        %v200 = vrot.slane %v199, 6
        %v201 = vsel %vm182, %v200, %v197
        %v202 = vsel %vm169, 1, 0
        %vm203 = vcmp.eq.s32.totalorder %v202, 1
        %v205 = vrot.slane %v201, 1
        %v207 = vsel %vm203, 0.0, %v205
        %v208 = vsel %vm165, 1, 0
        %vm209 = vcmp.eq.s32.totalorder %v208, 1
        %v210 = vsel %vm209, %v207, %v197
        %v211 = vmul.f32 %v158, 4.0
        %v212 = vsub.f32 %v211, %v195
        %v213 = vsub.f32 %v212, %v210
        %v214 = vsub.f32 %v213, %v174
        %v215 = vsub.f32 %v214, %v179
        %216 = vst [vmem:[%s151] sm:$0x3] %v215
        %s217 = sand.u32 %s68, 1
        %s218 = scalar_lea.sflag [#allocation4], %s217
        %s219 = sand.u32 %s68, 1
        %s220 = smul.addr %s219, 2
        %s221 = scalar_lea.vmem [#allocation5], %s220
        // Predicated region
        $region29: #{tpu_custom_call.1} parent=23 // pred_check
          %p222 = pneg %p78
        $region30: #{tpu_custom_call.1} parent=23 // pred_check_branch
          %224 = sbr.rel (%p222) target = $region32
        $region31: #{tpu_custom_call.1} parent=23 // pred_region
          %s226 = ssub.s32 32, 32
          %227 = vsyncadd %s218, %s226
          %s228 = sadd.s32 %s23, %s22
          %s229 = smul.addr %s228, 32
          %s230 = scalar_lea.hbm %s1, %s229
          %s232 = sshll.u32 %s221, 4
          %s233 = int_to_ptr.vmem [resolvable:$true] %s232
          %235 = dma.vmem_to_hbm [thread:$0]  %s233, 32, %s230, %s218
        $region32: #{tpu_custom_call.1} parent=23 // pred_fallthru
          _
      $region24: #{tpu_custom_call.1} parent=5 // pred_fallthru
        _
      %p236 = scmp.le.s32.totalorder 2, %s13
      // Predicated region
      $region33: #{tpu_custom_call.1} parent=5 // pred_check
        %p237 = pneg %p236
      $region34: #{tpu_custom_call.1} parent=5 // pred_check_branch
        %239 = sbr.rel (%p237) target = $region36
      $region35: #{tpu_custom_call.1} parent=5 // pred_region
        %s240 = ssub.s32 %s13, 2
        // Predicated region
        $region37: #{tpu_custom_call.1} parent=35 // pred_check
          %p241 = pneg %p84
        $region38: #{tpu_custom_call.1} parent=35 // pred_check_branch
          %243 = sbr.rel (%p241) target = $region40
        $region39: #{tpu_custom_call.1} parent=35 // pred_region
          %s244 = sand.u32 %s69, 1
          %s245 = scalar_lea.sflag [#allocation4], %s244
          %s246 = sand.u32 %s69, 1
          %s247 = smul.addr %s246, 2
          %s248 = scalar_lea.vmem [#allocation5], %s247
          %249 = dma.done %s245, 32
        $region40: #{tpu_custom_call.1} parent=35 // pred_fallthru
          _
      $region36: #{tpu_custom_call.1} parent=5 // pred_fallthru
        _
    $region6: #{tpu_custom_call.1} parent=1 // loop_footer
      %s17 = sadd.s32 1, %s13
    $region7: #{tpu_custom_call.1} parent=1 // loop_footer_branch
      %12 = sbr.rel target = $region3
    $region8: #{tpu_custom_call.1} parent=1 // loop_exit
      _
    %250 = vsyncpa [#allocation3], 1
    %s251 = scalar_lea.sflag [#allocation3], 1
    %252 = vsyncpa %s251, 1
    %253 = vsyncpa [#allocation4], 1
    %s254 = scalar_lea.sflag [#allocation4], 1
    %255 = vsyncpa %s254, 1

</llo_original>
